<compile_context>
chip_gen: v7x
topology: tpu7x:2x2x1
jax: 0.10.0
libtpu: 0.0.40
codegen_flags: <defaults>
</compile_context>

<pallas_src>
import jax
import jax.numpy as jnp
from jax.experimental import pallas as pl
from jax.experimental.pallas import tpu as pltpu


# --------------------------- kernel 1: sentences ----------------------------
def _sentence_kernel(q_ref, x_ref, ar_ref, s_ref):
    """Word-level attention pooling for one tile of sentences.

    q_ref : [T, 1]    int32  relation label per sentence
    x_ref : [T, L, D] f32    word-level encoder output
    ar_ref: [C, D]    f32    assemble[c] @ relation[c]   (precomputed once)
    s_ref : [T, D]    f32    out: tanh(attention-pooled sentence representation)
    """
    x = x_ref[...]
    t, _, _ = x.shape
    c = ar_ref.shape[0]

    # Select ar[label] per sentence with an exact on-chip one-hot select
    # (avoids a JAX-side gather / extra HBM round trip for per-sentence rows).
    cls_iota = jax.lax.broadcasted_iota(jnp.int32, (t, c), 1)
    onehot = (cls_iota == q_ref[...]).astype(jnp.float32)                 # [T, C]
    arq = jnp.sum(onehot[:, :, None] * ar_ref[...][None, :, :], axis=1)   # [T, D]

    # word attention logits: x[n] . ar[label_n]
    wl = jnp.sum(x * arq[:, None, :], axis=-1)                            # [T, L]

    # softmax over the word axis (dim=1 of the original [n, L, 1] logits)
    m = jnp.max(wl, axis=-1, keepdims=True)
    p = jnp.exp(wl - m)
    denom = jnp.sum(p, axis=-1, keepdims=True)
    inv = pl.reciprocal(denom, approx=True)        # EUP slot (free alongside VPU)
    inv = inv * (2.0 - denom * inv)                # one Newton step -> ~f32 exact
    w = p * inv                                    # [T, L]

    # attention-weighted sum over words + tanh
    s = jnp.sum(w[:, :, None] * x, axis=1)         # [T, D]
    s_ref[...] = jnp.tanh(s)


# ------------------------------ kernel 2: bags -------------------------------
def _bag_kernel(q_ref, bag_ref, s_ref, awrel_ref, relt_ref, bias_ref, out_ref):
    """Bag-level attention + final logits for ALL bags in one grid step.

    q_ref    : [N, 1] int32   relation label per sentence
    bag_ref  : [N, 1] int32   bag id per sentence (values outside [0, B) ignored)
    s_ref    : [N, D] f32     sentence representations from kernel 1
    awrel_ref: [C, D] f32     attention_matrix * relation_matrix (elementwise)
    relt_ref : [D, C] f32     relation_matrix.T (pre-transposed in the wrapper)
    bias_ref : [1, C] f32
    out_ref  : [B, C] f32     bag logits (single lane-dense slab)
    """
    s = s_ref[...]
    n, _ = s.shape
    c = relt_ref.shape[1]
    b = out_ref.shape[0]

    # per-sentence scalar attention logit: sum_d s * att[label] * rel[label]
    cls_iota = jax.lax.broadcasted_iota(jnp.int32, (n, c), 1)
    onehot_c = (cls_iota == q_ref[...]).astype(jnp.float32)                    # [N, C]
    v = jnp.sum(onehot_c[:, :, None] * awrel_ref[...][None, :, :], axis=1)     # [N, D]
    a_logit = jnp.sum(s * v, axis=-1, keepdims=True)                           # [N, 1]

    # segment (per-bag) softmax over sentences via one-hot algebra -- no
    # per-bag Python loop, no variable-length slices, no tiny masked stores.
    bag_iota = jax.lax.broadcasted_iota(jnp.int32, (n, b), 1)
    in_bag = (bag_iota == bag_ref[...])                                        # [N, B] bool
    onehot_b = in_bag.astype(jnp.float32)
    masked = jnp.where(in_bag, a_logit, jnp.float32(-1e30))                    # [N, B]
    m_b = jnp.max(masked, axis=0, keepdims=True)                               # [1, B]
    p = onehot_b * jnp.exp(jnp.minimum(a_logit - m_b, 0.0))                    # [N, B]
    denom = jnp.sum(p, axis=0, keepdims=True)                                  # [1, B]
    denom = jnp.where(denom > 0.0, denom, 1.0)   # empty bag guard -> repr = 0
    inv = pl.reciprocal(denom, approx=True)
    inv = inv * (2.0 - denom * inv)              # Newton refinement
    wts = p * inv                                                              # [N, B]

    # bag representation and final logits (MXU)
    bag_repr = jnp.dot(wts.T, s, preferred_element_type=jnp.float32)           # [B, D]
    out_ref[...] = (jnp.dot(bag_repr, relt_ref[...],
                            preferred_element_type=jnp.float32) + bias_ref[...])


# --------------------------------- wrapper -----------------------------------
def sen_level_att_forward(x, attention_query, scope, params, *, sent_tile=8):
    """SenLevelAtt.forward.

    x:               [N, L, D] f32 word-level encoder outputs
    attention_query: [N] int32 relation label per sentence
    scope:           [num_bags+1] int32 contiguous bag offsets (scope[0]=0, scope[-1]=N)
    params: rel_w [C, D], rel_b [C], att_w [C, D], assemble [C, D, D]
    returns logits [num_bags, C]
    """
    assert sent_tile % 8 == 0, "sentence tile must be sublane aligned"
    n, l, d = x.shape
    c = params["rel_w"].shape[0]
    num_bags = scope.shape[0] - 1
    hp = jax.lax.Precision.HIGHEST

    # ---- one-time precomputes (tiny, O(C*D^2)); fused / pre-transposed ----
    ar = jnp.einsum("cde,ce->cd", params["assemble"], params["rel_w"],
                    precision=hp).astype(jnp.float32)                 # [C, D]
    awrel = (params["att_w"] * params["rel_w"]).astype(jnp.float32)   # [C, D]
    rel_t = params["rel_w"].T.astype(jnp.float32)                     # [D, C]
    bias = params["rel_b"].reshape(1, c).astype(jnp.float32)          # [1, C]

    # ---- pad the sentence axis to a multiple of the tile ----
    n_pad = ((n + sent_tile - 1) // sent_tile) * sent_tile
    pad = n_pad - n
    x_p = jnp.pad(x.astype(jnp.float32), ((0, pad), (0, 0), (0, 0)))
    q_p = jnp.pad(attention_query.astype(jnp.int32), ((0, pad),))[:, None]   # [N_pad, 1]
    sent_idx = jnp.arange(n_pad, dtype=jnp.int32)
    # bag id per sentence; padded sentences land at `num_bags` and are ignored.
    bag_ids = jnp.sum(sent_idx[:, None] >= scope[None, 1:].astype(jnp.int32),
                      axis=1).astype(jnp.int32)[:, None]                     # [N_pad, 1]

    # ---- kernel 1: heavy, HBM-bound word-level attention pooling ----
    # sent_tile is the main VMEM knob: per step ~2 * sent_tile*L*D*4 B of x is
    # double-buffered (size against 64 MiB physical VMEM on v7x).
    s = pl.pallas_call(
        _sentence_kernel,
        out_shape=jax.ShapeDtypeStruct((n_pad, d), jnp.float32),
        grid=(n_pad // sent_tile,),
        in_specs=[
            pl.BlockSpec((sent_tile, 1), lambda i: (i, 0)),
            pl.BlockSpec((sent_tile, l, d), lambda i: (i, 0, 0)),
            pl.BlockSpec((c, d), lambda i: (0, 0)),
        ],
        out_specs=pl.BlockSpec((sent_tile, d), lambda i: (i, 0)),
        compiler_params=pltpu.CompilerParams(dimension_semantics=("parallel",)),
    )(q_p, x_p, ar)

    # ---- kernel 2: all bags in one step (cheap; tile over bags only if N is huge) ----
    logits = pl.pallas_call(
        _bag_kernel,
        out_shape=jax.ShapeDtypeStruct((num_bags, c), jnp.float32),
        grid=(1,),
        in_specs=[
            pl.BlockSpec((n_pad, 1), lambda i: (0, 0)),
            pl.BlockSpec((n_pad, 1), lambda i: (0, 0)),
            pl.BlockSpec((n_pad, d), lambda i: (0, 0)),
            pl.BlockSpec((c, d), lambda i: (0, 0)),
            pl.BlockSpec((d, c), lambda i: (0, 0)),
            pl.BlockSpec((1, c), lambda i: (0, 0)),
        ],
        out_specs=pl.BlockSpec((num_bags, c), lambda i: (0, 0)),
        compiler_params=pltpu.CompilerParams(dimension_semantics=("arbitrary",)),
    )(q_p, bag_ids, s, awrel, rel_t, bias)

    return logits


# ---------------------------- pure-JAX reference -----------------------------
def _reference(x, attention_query, scope, params):
    hp = jax.lax.Precision.HIGHEST
    rel_q = params["rel_w"][attention_query]                 # [N, D]
    att_q = params["att_w"][attention_query]                 # [N, D]
    assemble = params["assemble"][attention_query]           # [N, D, D]
    xa = jnp.einsum("nld,nde->nle", x, assemble, precision=hp)
    wl = jnp.einsum("nle,ne->nl", xa, rel_q, precision=hp)
    w = jax.nn.softmax(wl, axis=1)
    s = jnp.tanh(jnp.einsum("nl,nld->nd", w, x, precision=hp))
    a_logit = jnp.sum(s * att_q * rel_q, axis=1)             # [N]
    reprs = []
    for i in range(scope.shape[0] - 1):
        lo, hi = int(scope[i]), int(scope[i + 1])
        sc = jax.nn.softmax(a_logit[lo:hi])
        reprs.append(jnp.einsum("l,ld->d", sc, s[lo:hi], precision=hp))
    stack = jnp.stack(reprs)
    return (jnp.einsum("bd,cd->bc", stack, params["rel_w"], precision=hp)
            + params["rel_b"][None, :])


def _xavier_uniform(key, shape):
    fan_in, fan_out = shape[-2], shape[-1]
    lim = (6.0 / (fan_in + fan_out)) ** 0.5
    return jax.random.uniform(key, shape, jnp.float32, -lim, lim)


def _xavier_normal(key, shape):
    fan_in, fan_out = shape[-2], shape[-1]
    std = (2.0 / (fan_in + fan_out)) ** 0.5
    return std * jax.random.normal(key, shape, jnp.float32)


if __name__ == "__main__":
    L = 16        # words per sentence (real model: 120)
    D = 32        # encoder_output_dim (real model: 230)
    C = 8         # num_classes
    N = 16        # total sentences
    scope = jnp.array([0, 3, 8, 12, 16], dtype=jnp.int32)    # 4 bags

    root = jax.random.PRNGKey(0)
    k = jax.random.split(root, 6)
    x = jax.random.normal(k[0], (N, L, D), jnp.float32)
    attention_query = jax.random.randint(k[1], (N,), 0, C, dtype=jnp.int32)

    params = {
        "rel_w": _xavier_uniform(k[2], (C, D)),              # relation_matrix.weight
        "rel_b": jax.random.normal(k[3], (C,), jnp.float32), # self.bias
        "att_w": _xavier_uniform(k[4], (C, D)),              # attention_matrix.weight
        "assemble": _xavier_normal(k[5], (C, D, D)),         # assemble_matrix
    }

    logits = sen_level_att_forward(x, attention_query, scope, params, sent_tile=8)
    jax.block_until_ready(logits)

    ref = _reference(x, attention_query, scope, params)
    assert logits.shape == (scope.shape[0] - 1, C)
    # tolerance covers the (possibly reduced-precision) MXU passes of the two
    # small in-kernel f32 matmuls; everything accuracy-critical is exact f32.
    assert jnp.allclose(logits, ref, atol=1e-2, rtol=1e-2), (
        float(jnp.max(jnp.abs(logits - ref))), logits, ref)

    print("KERNEL_OK")
</pallas_src>

<mosaic_0001>
module attributes {stable_mosaic.version = 11 : i64} {
  func.func @_sentence_kernel(%arg0: i32, %arg1: memref<8x1xi32, #tpu.memory_space<vmem>>, %arg2: memref<8x16x32xf32, #tpu.memory_space<vmem>>, %arg3: memref<8x32xf32, #tpu.memory_space<vmem>>, %arg4: memref<8x32xf32, #tpu.memory_space<vmem>>) attributes {dimension_semantics = [#tpu.dimension_semantics<parallel>], iteration_bounds = array<i64: 2>, scalar_prefetch = 0 : i64, scratch_operands = 0 : i64, tpu.core_type = #tpu.core_type<tc>, window_params = [{transform_indices = @transform_0, window_bounds = array<i64: 8, 1>}, {transform_indices = @transform_1, window_bounds = array<i64: 8, 16, 32>}, {pipeline_mode = #tpu.pipeline_mode<synchronous>, transform_indices = @transform_2, window_bounds = array<i64: 8, 32>}, {transform_indices = @transform_3, window_bounds = array<i64: 8, 32>}]} {
    %c0 = arith.constant 0 : index
    %c0_0 = arith.constant 0 : index
    %c0_1 = arith.constant 0 : index
    %0 = vector.load %arg2[%c0, %c0_0, %c0_1] : memref<8x16x32xf32, #tpu.memory_space<vmem>>, vector<8x16x32xf32>
    %1 = tpu.iota {dimensions = array<i32: 1>} : vector<8x8xi32>
    %c0_2 = arith.constant 0 : index
    %c0_3 = arith.constant 0 : index
    %2 = vector.load %arg1[%c0_2, %c0_3] : memref<8x1xi32, #tpu.memory_space<vmem>>, vector<8x1xi32>
    %3 = vector.broadcast %2 : vector<8x1xi32> to vector<8x8xi32>
    %4 = arith.cmpi eq, %1, %3 : vector<8x8xi32>
    %5 = arith.extui %4 : vector<8x8xi1> to vector<8x8xi32>
    %6 = arith.sitofp %5 : vector<8x8xi32> to vector<8x8xf32>
    %7 = vector.shape_cast %6 : vector<8x8xf32> to vector<8x8x1xf32>
    %c0_4 = arith.constant 0 : index
    %c0_5 = arith.constant 0 : index
    %8 = vector.load %arg3[%c0_4, %c0_5] : memref<8x32xf32, #tpu.memory_space<vmem>>, vector<8x32xf32>
    %9 = vector.shape_cast %8 : vector<8x32xf32> to vector<1x8x32xf32>
    %10 = vector.broadcast %7 : vector<8x8x1xf32> to vector<8x8x32xf32>
    %11 = vector.broadcast %9 : vector<1x8x32xf32> to vector<8x8x32xf32>
    %12 = arith.mulf %10, %11 : vector<8x8x32xf32>
    %cst = arith.constant dense<0.000000e+00> : vector<8x32xf32>
    %13 = vector.multi_reduction <add>, %12, %cst [1] : vector<8x8x32xf32> to vector<8x32xf32>
    %14 = vector.shape_cast %13 : vector<8x32xf32> to vector<8x1x32xf32>
    %15 = vector.broadcast %14 : vector<8x1x32xf32> to vector<8x16x32xf32>
    %16 = arith.mulf %0, %15 : vector<8x16x32xf32>
    %cst_6 = arith.constant dense<0.000000e+00> : vector<8x16xf32>
    %17 = vector.multi_reduction <add>, %16, %cst_6 [2] : vector<8x16x32xf32> to vector<8x16xf32>
    %cst_7 = arith.constant dense<0xFF800000> : vector<8xf32>
    %18 = vector.multi_reduction <maximumf>, %17, %cst_7 [1] : vector<8x16xf32> to vector<8xf32>
    %19 = vector.shape_cast %18 : vector<8xf32> to vector<8x1xf32>
    %20 = vector.broadcast %19 : vector<8x1xf32> to vector<8x16xf32>
    %21 = arith.subf %17, %20 : vector<8x16xf32>
    %22 = math.exp %21 : vector<8x16xf32>
    %cst_8 = arith.constant dense<0.000000e+00> : vector<8xf32>
    %23 = vector.multi_reduction <add>, %22, %cst_8 [1] : vector<8x16xf32> to vector<8xf32>
    %24 = vector.shape_cast %23 : vector<8xf32> to vector<8x1xf32>
    %25 = tpu.reciprocal %24 {approx = true} : vector<8x1xf32> -> vector<8x1xf32>
    %26 = arith.mulf %24, %25 : vector<8x1xf32>
    %cst_9 = arith.constant 2.000000e+00 : f32
    %27 = vector.broadcast %cst_9 : f32 to vector<8x1xf32>
    %28 = arith.subf %27, %26 : vector<8x1xf32>
    %29 = arith.mulf %25, %28 : vector<8x1xf32>
    %30 = vector.broadcast %29 : vector<8x1xf32> to vector<8x16xf32>
    %31 = arith.mulf %22, %30 : vector<8x16xf32>
    %32 = vector.shape_cast %31 : vector<8x16xf32> to vector<8x16x1xf32>
    %33 = vector.broadcast %32 : vector<8x16x1xf32> to vector<8x16x32xf32>
    %34 = arith.mulf %33, %0 : vector<8x16x32xf32>
    %cst_10 = arith.constant dense<0.000000e+00> : vector<8x32xf32>
    %35 = vector.multi_reduction <add>, %34, %cst_10 [1] : vector<8x16x32xf32> to vector<8x32xf32>
    %36 = math.tanh %35 : vector<8x32xf32>
    %c0_11 = arith.constant 0 : index
    %c0_12 = arith.constant 0 : index
    %37 = vector.load %arg4[%c0_11, %c0_12] : memref<8x32xf32, #tpu.memory_space<vmem>>, vector<8x32xf32>
    tpu.vector_store %arg4[%c0_11, %c0_12], %36 {strides = array<i32>} : memref<8x32xf32, #tpu.memory_space<vmem>>, vector<8x32xf32>,
    return
  }
  func.func @transform_0(%arg0: i32) -> (i32, i32) {
    %c0_i32 = arith.constant 0 : i32
    %c0_i32_0 = arith.constant 0 : i32
    return %arg0, %c0_i32 : i32, i32
  }
  func.func @transform_1(%arg0: i32) -> (i32, i32, i32) {
    %c0_i32 = arith.constant 0 : i32
    %c0_i32_0 = arith.constant 0 : i32
    %c0_i32_1 = arith.constant 0 : i32
    return %arg0, %c0_i32, %c0_i32_0 : i32, i32, i32
  }
  func.func @transform_2(%arg0: i32) -> (i32, i32) {
    %c0_i32 = arith.constant 0 : i32
    %c0_i32_0 = arith.constant 0 : i32
    %c0_i32_1 = arith.constant 0 : i32
    return %c0_i32, %c0_i32_0 : i32, i32
  }
  func.func @transform_3(%arg0: i32) -> (i32, i32) {
    %c0_i32 = arith.constant 0 : i32
    %c0_i32_0 = arith.constant 0 : i32
    return %arg0, %c0_i32 : i32, i32
  }
}

</mosaic_0001>

<llo_original>
// kernel: tpu_custom_call.1
$region0: #{tpu_custom_call.1}
  #allocation0 [shape = 'u32[]', space=smem, size = 0x4, offset = 0x4, fixed_abs, tag = 'smem constant byte address 0x4 - core index']
  #allocation1 [shape = 'u32[144,128]{1,0:T(1,128)}', space=vmem, size = 0x12000, scoped, tag = 'internal scratch']
  %s0 = inlined_call_operand.vmem [shape: s32[16,1], index: 0, kind: input, shape index: {}]
  %s1 = inlined_call_operand.hbm [shape: f32[16,16,32], index: 1, kind: input, shape index: {}]
  %s2 = inlined_call_operand.vmem [shape: f32[8,32], index: 2, kind: input, shape index: {}]
  %s3 = inlined_call_operand.hbm [shape: f32[16,32], index: 3, kind: output, shape index: {}]
  %s4 = sld [smem:[#allocation0]]
  $region49: #{tpu_custom_call.1} parent=0
    _
  %s6 = ssub.s32 1, %s4
  %s7 = scalar_select 0, %s6, %s4
  $region1: #{tpu_custom_call.1} parent=0
    #allocation2 [shape = 'u8[131072]{0}', space=vmem, size = 0x20000, scoped, tag = 'input window, operand 1']
    #allocation3 [shape = 's32[2]{0}', space=sflag, size = 0x8, scoped, tag = 'scoped memory for tpu_custom_call.1']
    #allocation4 [shape = 's32[2]{0}', space=sflag, size = 0x8, scoped, tag = 'scoped memory for tpu_custom_call.1']
    #allocation5 [shape = 'u8[8192]{0}', space=vmem, size = 0x2000, scoped, tag = 'output window, operand 0']
    %8 = vsyncpa [#allocation3], 0
    %s9 = scalar_lea.sflag [#allocation3], 1
    %10 = vsyncpa %s9, 0
    %11 = vsyncpa [#allocation4], 0
    %s12 = scalar_lea.sflag [#allocation4], 1
    %13 = vsyncpa %s12, 0
    loop: start=0, step=1, limit=4
    $region2: #{tpu_custom_call.1} parent=1 // loop_pre_header
      _
    $region3: #{tpu_custom_call.1} parent=1 // loop_header
      %s15 = sphi 0, %s19
      %p16 = scmp.ge.s32.totalorder %s15, 4
      %s25 = sphi 0, %s27
      %s28 = sphi 0, %s25
      %s29 = sphi 0, %s28
      %s45 = sphi 0, %s29
      %s51 = sphi 0, %s53
      %s54 = sphi 0, %s51
      %s55 = sphi 0, %s54
      %s71 = sphi 0, %s55
      %s75 = sphi 0, %s75
      %s77 = sphi 0, %s75
      %s78 = sphi 0, %s77
      %s92 = sphi 0, %s78
      %s98 = sphi 0, %s100
      %s101 = sphi 0, %s98
      %s102 = sphi 0, %s101
      %s118 = sphi 0, %s102
    $region4: #{tpu_custom_call.1} parent=1 // loop_header_branch
      %18 = sbr.rel (%p16) target = $region8
    $region5: #{tpu_custom_call.1} parent=1 // loop_body
      %s20 = ssub.s32 %s15, 1
      %s21 = ssub.s32 %s15, 2
      %s22 = sadd.s32 %s15, 1
      %s23 = ssub.s32 %s15, %s22
      %p24 = scmp.eq.s32.totalorder %s23, 0
      %s26 = sadd.s32 %s25, 1
      %s27 = scalar_select %p24, %s25, %s26
      %p30 = pneg %p24
      %p31 = scmp.eq.s32.totalorder %s15, 1
      %p32 = por %p30, %p31
      %p33 = scmp.ne.s32.totalorder %s25, %s28
      %p34 = scmp.eq.s32.totalorder %s15, 0
      %p35 = por %p33, %p34
      %p36 = scmp.ne.s32.totalorder %s25, %s28
      %p37 = scmp.eq.s32.totalorder %s20, 1
      %p38 = por %p36, %p37
      %p39 = scmp.ne.s32.totalorder %s28, %s29
      %p40 = scmp.eq.s32.totalorder %s20, 0
      %p41 = por %p39, %p40
      %p42 = scmp.ne.s32.totalorder %s28, %s29
      %p43 = scmp.eq.s32.totalorder %s21, 1
      %p44 = por %p42, %p43
      %p46 = scmp.ne.s32.totalorder %s29, %s45
      %p47 = scmp.eq.s32.totalorder %s21, 0
      %p48 = por %p46, %p47
      %s49 = ssub.s32 %s15, %s22
      %p50 = scmp.eq.s32.totalorder %s49, 0
      %s52 = sadd.s32 %s51, 1
      %s53 = scalar_select %p50, %s51, %s52
      %p56 = pneg %p50
      %p57 = scmp.eq.s32.totalorder %s15, 1
      %p58 = por %p56, %p57
      %p59 = scmp.ne.s32.totalorder %s51, %s54
      %p60 = scmp.eq.s32.totalorder %s15, 0
      %p61 = por %p59, %p60
      %p62 = scmp.ne.s32.totalorder %s51, %s54
      %p63 = scmp.eq.s32.totalorder %s20, 1
      %p64 = por %p62, %p63
      %p65 = scmp.ne.s32.totalorder %s54, %s55
      %p66 = scmp.eq.s32.totalorder %s20, 0
      %p67 = por %p65, %p66
      %p68 = scmp.ne.s32.totalorder %s54, %s55
      %p69 = scmp.eq.s32.totalorder %s21, 1
      %p70 = por %p68, %p69
      %p72 = scmp.ne.s32.totalorder %s55, %s71
      %p73 = scmp.eq.s32.totalorder %s21, 0
      %p74 = por %p72, %p73
      %s76 = sadd.s32 %s75, 1
      %p79 = scmp.eq.s32.totalorder %s15, 1
      %p80 = scmp.ne.s32.totalorder %s75, %s77
      %p81 = scmp.eq.s32.totalorder %s15, 0
      %p82 = por %p80, %p81
      %p83 = scmp.ne.s32.totalorder %s75, %s77
      %p84 = scmp.eq.s32.totalorder %s20, 1
      %p85 = por %p83, %p84
      %p86 = scmp.ne.s32.totalorder %s77, %s78
      %p87 = scmp.eq.s32.totalorder %s20, 0
      %p88 = por %p86, %p87
      %p89 = scmp.ne.s32.totalorder %s77, %s78
      %p90 = scmp.eq.s32.totalorder %s21, 1
      %p91 = por %p89, %p90
      %p93 = scmp.ne.s32.totalorder %s78, %s92
      %p94 = scmp.eq.s32.totalorder %s21, 0
      %p95 = por %p93, %p94
      %s96 = ssub.s32 %s15, %s22
      %p97 = scmp.eq.s32.totalorder %s96, 0
      %s99 = sadd.s32 %s98, 1
      %s100 = scalar_select %p97, %s98, %s99
      %p103 = pneg %p97
      %p104 = scmp.eq.s32.totalorder %s15, 1
      %p105 = por %p103, %p104
      %p106 = scmp.ne.s32.totalorder %s98, %s101
      %p107 = scmp.eq.s32.totalorder %s15, 0
      %p108 = por %p106, %p107
      %p109 = scmp.ne.s32.totalorder %s98, %s101
      %p110 = scmp.eq.s32.totalorder %s20, 1
      %p111 = por %p109, %p110
      %p112 = scmp.ne.s32.totalorder %s101, %s102
      %p113 = scmp.eq.s32.totalorder %s20, 0
      %p114 = por %p112, %p113
      %p115 = scmp.ne.s32.totalorder %s101, %s102
      %p116 = scmp.eq.s32.totalorder %s21, 1
      %p117 = por %p115, %p116
      %p119 = scmp.ne.s32.totalorder %s102, %s118
      %p120 = scmp.eq.s32.totalorder %s21, 0
      %p121 = por %p119, %p120
      %p122 = scmp.le.s32.totalorder 1, %s15
      %p123 = scmp.lt.s32.totalorder %s15, 3
      %p124 = pnand %p122, %p123
      %p125 = pneg %p124
      // Predicated region
      $region9: #{tpu_custom_call.1} parent=5 // pred_check
        _
      $region10: #{tpu_custom_call.1} parent=5 // pred_check_branch
        %127 = sbr.rel (%p124) target = $region12
      $region11: #{tpu_custom_call.1} parent=5 // pred_region
        %s128 = ssub.s32 %s15, 1
        // Predicated region
        $region13: #{tpu_custom_call.1} parent=11 // pred_check
          %p129 = pneg %p88
        $region14: #{tpu_custom_call.1} parent=11 // pred_check_branch
          %131 = sbr.rel (%p129) target = $region16
        $region15: #{tpu_custom_call.1} parent=11 // pred_region
          _
        $region16: #{tpu_custom_call.1} parent=11 // pred_fallthru
          _
      $region12: #{tpu_custom_call.1} parent=5 // pred_fallthru
        _
      %p132 = scmp.lt.s32.totalorder %s15, 2
      // Predicated region
      $region17: #{tpu_custom_call.1} parent=5 // pred_check
        %p133 = pneg %p132
      $region18: #{tpu_custom_call.1} parent=5 // pred_check_branch
        %135 = sbr.rel (%p133) target = $region20
      $region19: #{tpu_custom_call.1} parent=5 // pred_region
        // Predicated region
        $region21: #{tpu_custom_call.1} parent=19 // pred_check
          %p136 = pneg %p35
        $region22: #{tpu_custom_call.1} parent=19 // pred_check_branch
          %138 = sbr.rel (%p136) target = $region24
        $region23: #{tpu_custom_call.1} parent=19 // pred_region
          %p139 = scmp.lt.s32.totalorder %s15, 1
          %s140 = scalar_select %p139, %s15, 1
          %s141 = smul.addr %s140, 8
          %s142 = scalar_lea.vmem %s0, %s141
        $region24: #{tpu_custom_call.1} parent=19 // pred_fallthru
          _
        // Predicated region
        $region25: #{tpu_custom_call.1} parent=19 // pred_check
          %p143 = pneg %p61
        $region26: #{tpu_custom_call.1} parent=19 // pred_check_branch
          %145 = sbr.rel (%p143) target = $region28
        $region27: #{tpu_custom_call.1} parent=19 // pred_region
          %s146 = sand.u32 %s51, 1
          %s147 = scalar_lea.sflag [#allocation3], %s146
          %s148 = sand.u32 %s51, 1
          %s149 = smul.addr %s148, 128
          %s150 = scalar_lea.vmem [#allocation2], %s149
          %s151 = smul.u32 8, %s15
          %s153 = ssub.s32 2048, 2048
          %154 = vsyncadd %s147, %s153
          %s155 = smul.addr %s151, 2
          %s156 = smul.addr %s155, 128
          %s157 = scalar_lea.hbm %s1, %s156
          %s158 = sshll.u32 %s150, 4
          %s159 = int_to_ptr.vmem [resolvable:$true] %s158
          %164 = dma.hbm_to_vmem [thread:$0]  %s157, 2048, %s159, %s147, 128, 128, 8
        $region28: #{tpu_custom_call.1} parent=19 // pred_fallthru
          _
      $region20: #{tpu_custom_call.1} parent=5 // pred_fallthru
        _
      %p165 = scmp.le.s32.totalorder 1, %s15
      %p166 = scmp.lt.s32.totalorder %s15, 3
      %p167 = pnand %p165, %p166
      %p168 = pneg %p167
      // Predicated region
      $region29: #{tpu_custom_call.1} parent=5 // pred_check
        _
      $region30: #{tpu_custom_call.1} parent=5 // pred_check_branch
        %170 = sbr.rel (%p167) target = $region32
      $region31: #{tpu_custom_call.1} parent=5 // pred_region
        %s171 = ssub.s32 %s15, 1
        %s172 = sand.u32 %s54, 1
        %s173 = scalar_lea.sflag [#allocation3], %s172
        %s174 = sand.u32 %s54, 1
        %s175 = smul.addr %s174, 128
        %s176 = scalar_lea.vmem [#allocation2], %s175
        // Predicated region
        $region33: #{tpu_custom_call.1} parent=31 // pred_check
          %p177 = pneg %p67
        $region34: #{tpu_custom_call.1} parent=31 // pred_check_branch
          %179 = sbr.rel (%p177) target = $region36
        $region35: #{tpu_custom_call.1} parent=31 // pred_region
          %180 = dma.done %s173, 2048
        $region36: #{tpu_custom_call.1} parent=31 // pred_fallthru
          _
        %p181 = scmp.lt.s32.totalorder %s20, 1
        %s182 = scalar_select %p181, %s20, 1
        %s183 = smul.addr %s182, 8
        %s184 = scalar_lea.vmem %s0, %s183
        %p185 = pneg %p41
        %p186 = pneg %p38
        %s187 = sand.u32 %s54, 1
        %s188 = scalar_lea.sflag [#allocation3], %s187
        %s189 = sand.u32 %s54, 1
        %s190 = smul.addr %s189, 128
        %s191 = scalar_lea.vmem [#allocation2], %s190
        %p192 = pneg %p67
        %p193 = pneg %p64
        %p194 = pneg %p88
        %p195 = pneg %p85
        %p196 = pneg %p114
        %p197 = pneg %p111
        %s198 = sand.u32 %s101, 1
        %s199 = scalar_lea.sflag [#allocation4], %s198
        %s200 = sand.u32 %s101, 1
        %s201 = smul.addr %s200, 8
        %s202 = scalar_lea.vmem [#allocation5], %s201
        %p203 = scmp.lt.s32.totalorder %s20, 1
        %s204 = scalar_select %p203, %s20, 1
        %s205 = smul.addr %s204, 8
        %s206 = scalar_lea.vmem %s0, %s205
        %s207 = smul.u32 8, %s20
        %v208 = vld [vmem:[%s176] sm:$0xff]
        %v209 = vld [vmem:[%s176 + $0x8] sm:$0xff]
        %v210 = vld [vmem:[%s176 + $0x10] sm:$0xff]
        %v211 = vld [vmem:[%s176 + $0x18] sm:$0xff]
        %v212 = vld [vmem:[%s176 + $0x20] sm:$0xff]
        %v213 = vld [vmem:[%s176 + $0x28] sm:$0xff]
        %v214 = vld [vmem:[%s176 + $0x30] sm:$0xff]
        %v215 = vld [vmem:[%s176 + $0x38] sm:$0xff]
        %v216 = vld [vmem:[%s176 + $0x40] sm:$0xff]
        %v217 = vld [vmem:[%s176 + $0x48] sm:$0xff]
        %v218 = vld [vmem:[%s176 + $0x50] sm:$0xff]
        %v219 = vld [vmem:[%s176 + $0x58] sm:$0xff]
        %v220 = vld [vmem:[%s176 + $0x60] sm:$0xff]
        %v221 = vld [vmem:[%s176 + $0x68] sm:$0xff]
        %v222 = vld [vmem:[%s176 + $0x70] sm:$0xff]
        %v223 = vld [vmem:[%s176 + $0x78] sm:$0xff]
        %v224 = vlaneseq
        %v225 = vand.u32 %v224, 127
        %v226 = vld [vmem:[%s206] sm:$0xff]
        %227 = vset.pattern.permute.xlu0 0
        %228 = vperm.xlu0 %227, %v226
        %v229 = vpop.permute.xlu0 %228
        %vm230 = vcmp.eq.s32.totalorder %v225, %v229
        %v231 = vsel %vm230, 1, 0
        %v232 = vcvt.s32.f32 %v231
        %v233 = vlaneseq
        %v234 = vshrl.u32 %v233, 7
        %v235 = vsub.s32 0, %v234
        %v236 = vrot.slane %v232, %v235
        %238 = vbcast.lane.b32.xlu0 %v236, 256
        %v239 = vpop.permute.xlu0 %238
        %v240 = vlaneseq
        %v241 = vshrl.u32 %v240, 7
        %v242 = vsub.s32 1, %v241
        %v243 = vrot.slane %v232, %v242
        %245 = vbcast.lane.b32.xlu0 %v243, 256
        %v246 = vpop.permute.xlu0 %245
        %v247 = vlaneseq
        %v248 = vshrl.u32 %v247, 7
        %v249 = vsub.s32 2, %v248
        %v250 = vrot.slane %v232, %v249
        %252 = vbcast.lane.b32.xlu0 %v250, 256
        %v253 = vpop.permute.xlu0 %252
        %v254 = vlaneseq
        %v255 = vshrl.u32 %v254, 7
        %v256 = vsub.s32 3, %v255
        %v257 = vrot.slane %v232, %v256
        %259 = vbcast.lane.b32.xlu0 %v257, 256
        %v260 = vpop.permute.xlu0 %259
        %v261 = vlaneseq
        %v262 = vshrl.u32 %v261, 7
        %v263 = vsub.s32 4, %v262
        %v264 = vrot.slane %v232, %v263
        %266 = vbcast.lane.b32.xlu0 %v264, 256
        %v267 = vpop.permute.xlu0 %266
        %v268 = vlaneseq
        %v269 = vshrl.u32 %v268, 7
        %v270 = vsub.s32 5, %v269
        %v271 = vrot.slane %v232, %v270
        %273 = vbcast.lane.b32.xlu0 %v271, 256
        %v274 = vpop.permute.xlu0 %273
        %v275 = vlaneseq
        %v276 = vshrl.u32 %v275, 7
        %v277 = vsub.s32 6, %v276
        %v278 = vrot.slane %v232, %v277
        %280 = vbcast.lane.b32.xlu0 %v278, 256
        %v281 = vpop.permute.xlu0 %280
        %v282 = vlaneseq
        %v283 = vshrl.u32 %v282, 7
        %v284 = vsub.s32 7, %v283
        %v285 = vrot.slane %v232, %v284
        %287 = vbcast.lane.b32.xlu0 %v285, 256
        %v288 = vpop.permute.xlu0 %287
        %v289 = vld [vmem:[%s2] sm:$0xff]
        %v290 = vmul.f32 %v239, %v289
        %v291 = vmul.f32 %v246, %v289
        %v292 = vmul.f32 %v253, %v289
        %v293 = vmul.f32 %v260, %v289
        %v294 = vmul.f32 %v267, %v289
        %v295 = vmul.f32 %v274, %v289
        %v296 = vmul.f32 %v281, %v289
        %v297 = vmul.f32 %v288, %v289
        %vm298 = vcmask 261120
        %v299 = vsel %vm298, %v290, 0.0
        %v300 = vrot.slane %v299, 4
        %v301 = vadd.f32 %v299, %v300
        %v302 = vrot.slane %v301, 2
        %v303 = vadd.f32 %v301, %v302
        %v304 = vrot.slane %v303, 1
        %v305 = vadd.f32 %v303, %v304
        %v306 = vsel %vm298, %v291, 0.0
        %v307 = vrot.slane %v306, 4
        %v308 = vadd.f32 %v306, %v307
        %v309 = vrot.slane %v308, 2
        %v310 = vadd.f32 %v308, %v309
        %v311 = vrot.slane %v310, 1
        %v312 = vadd.f32 %v310, %v311
        %v313 = vsel %vm298, %v292, 0.0
        %v314 = vrot.slane %v313, 4
        %v315 = vadd.f32 %v313, %v314
        %v316 = vrot.slane %v315, 2
        %v317 = vadd.f32 %v315, %v316
        %v318 = vrot.slane %v317, 1
        %v319 = vadd.f32 %v317, %v318
        %v320 = vsel %vm298, %v293, 0.0
        %v321 = vrot.slane %v320, 4
        %v322 = vadd.f32 %v320, %v321
        %v323 = vrot.slane %v322, 2
        %v324 = vadd.f32 %v322, %v323
        %v325 = vrot.slane %v324, 1
        %v326 = vadd.f32 %v324, %v325
        %v327 = vsel %vm298, %v294, 0.0
        %v328 = vrot.slane %v327, 4
        %v329 = vadd.f32 %v327, %v328
        %v330 = vrot.slane %v329, 2
        %v331 = vadd.f32 %v329, %v330
        %v332 = vrot.slane %v331, 1
        %v333 = vadd.f32 %v331, %v332
        %v334 = vsel %vm298, %v295, 0.0
        %v335 = vrot.slane %v334, 4
        %v336 = vadd.f32 %v334, %v335
        %v337 = vrot.slane %v336, 2
        %v338 = vadd.f32 %v336, %v337
        %v339 = vrot.slane %v338, 1
        %v340 = vadd.f32 %v338, %v339
        %v341 = vsel %vm298, %v296, 0.0
        %v342 = vrot.slane %v341, 4
        %v343 = vadd.f32 %v341, %v342
        %v344 = vrot.slane %v343, 2
        %v345 = vadd.f32 %v343, %v344
        %v346 = vrot.slane %v345, 1
        %v347 = vadd.f32 %v345, %v346
        %v348 = vsel %vm298, %v297, 0.0
        %v349 = vrot.slane %v348, 4
        %v350 = vadd.f32 %v348, %v349
        %v351 = vrot.slane %v350, 2
        %v352 = vadd.f32 %v350, %v351
        %v353 = vrot.slane %v352, 1
        %v354 = vadd.f32 %v352, %v353
        %v355 = vmul.f32 %v208, %v305
        %v356 = vmul.f32 %v209, %v305
        %v357 = vmul.f32 %v210, %v312
        %v358 = vmul.f32 %v211, %v312
        %v359 = vmul.f32 %v212, %v319
        %v360 = vmul.f32 %v213, %v319
        %v361 = vmul.f32 %v214, %v326
        %v362 = vmul.f32 %v215, %v326
        %v363 = vmul.f32 %v216, %v333
        %v364 = vmul.f32 %v217, %v333
        %v365 = vmul.f32 %v218, %v340
        %v366 = vmul.f32 %v219, %v340
        %v367 = vmul.f32 %v220, %v347
        %v368 = vmul.f32 %v221, %v347
        %v369 = vmul.f32 %v222, %v354
        %v370 = vmul.f32 %v223, %v354
        %v371 = vsel %vm298, %v355, 0.0
        %372 = vadd.xlane.f32.xlu0 %v371
        %v373 = vpop.xlane.xlu0 %372
        %v374 = vsel %vm298, %v356, 0.0
        %375 = vadd.xlane.f32.xlu0 %v374
        %v376 = vpop.xlane.xlu0 %375
        %v377 = vsel %vm298, %v357, 0.0
        %378 = vadd.xlane.f32.xlu0 %v377
        %v379 = vpop.xlane.xlu0 %378
        %v380 = vsel %vm298, %v358, 0.0
        %381 = vadd.xlane.f32.xlu0 %v380
        %v382 = vpop.xlane.xlu0 %381
        %v383 = vsel %vm298, %v359, 0.0
        %384 = vadd.xlane.f32.xlu0 %v383
        %v385 = vpop.xlane.xlu0 %384
        %v386 = vsel %vm298, %v360, 0.0
        %387 = vadd.xlane.f32.xlu0 %v386
        %v388 = vpop.xlane.xlu0 %387
        %v389 = vsel %vm298, %v361, 0.0
        %390 = vadd.xlane.f32.xlu0 %v389
        %v391 = vpop.xlane.xlu0 %390
        %v392 = vsel %vm298, %v362, 0.0
        %393 = vadd.xlane.f32.xlu0 %v392
        %v394 = vpop.xlane.xlu0 %393
        %v395 = vsel %vm298, %v363, 0.0
        %396 = vadd.xlane.f32.xlu0 %v395
        %v397 = vpop.xlane.xlu0 %396
        %v398 = vsel %vm298, %v364, 0.0
        %399 = vadd.xlane.f32.xlu0 %v398
        %v400 = vpop.xlane.xlu0 %399
        %v401 = vsel %vm298, %v365, 0.0
        %402 = vadd.xlane.f32.xlu0 %v401
        %v403 = vpop.xlane.xlu0 %402
        %v404 = vsel %vm298, %v366, 0.0
        %405 = vadd.xlane.f32.xlu0 %v404
        %v406 = vpop.xlane.xlu0 %405
        %v407 = vsel %vm298, %v367, 0.0
        %408 = vadd.xlane.f32.xlu0 %v407
        %v409 = vpop.xlane.xlu0 %408
        %v410 = vsel %vm298, %v368, 0.0
        %411 = vadd.xlane.f32.xlu0 %v410
        %v412 = vpop.xlane.xlu0 %411
        %v413 = vsel %vm298, %v369, 0.0
        %414 = vadd.xlane.f32.xlu0 %v413
        %v415 = vpop.xlane.xlu0 %414
        %v416 = vsel %vm298, %v370, 0.0
        %417 = vadd.xlane.f32.xlu0 %v416
        %v418 = vpop.xlane.xlu0 %417
        %v435 = vlaneseq
        %v436 = vshrl.u32 %v435, 7
        %v437 = vsub.s32 %v225, %v436
        %v438 = vrot.slane %v373, %v437
        %v439 = vadd.s32 %v225, 4294967288
        %v440 = vlaneseq
        %v441 = vshrl.u32 %v440, 7
        %v442 = vsub.s32 %v439, %v441
        %v443 = vrot.slane %v376, %v442
        %vm444 = vcmask 130112
        %v445 = vsel %vm444, %v443, %v438
        %v446 = vlaneseq
        %v447 = vshrl.u32 %v446, 7
        %v448 = vsub.s32 %v225, %v447
        %v449 = vrot.slane %v379, %v448
        %v450 = vlaneseq
        %v451 = vshrl.u32 %v450, 7
        %v452 = vsub.s32 %v439, %v451
        %v453 = vrot.slane %v382, %v452
        %v454 = vsel %vm444, %v453, %v449
        %v455 = vlaneseq
        %v456 = vshrl.u32 %v455, 7
        %v457 = vsub.s32 %v225, %v456
        %v458 = vrot.slane %v385, %v457
        %v459 = vlaneseq
        %v460 = vshrl.u32 %v459, 7
        %v461 = vsub.s32 %v439, %v460
        %v462 = vrot.slane %v388, %v461
        %v463 = vsel %vm444, %v462, %v458
        %v464 = vlaneseq
        %v465 = vshrl.u32 %v464, 7
        %v466 = vsub.s32 %v225, %v465
        %v467 = vrot.slane %v391, %v466
        %v468 = vlaneseq
        %v469 = vshrl.u32 %v468, 7
        %v470 = vsub.s32 %v439, %v469
        %v471 = vrot.slane %v394, %v470
        %v472 = vsel %vm444, %v471, %v467
        %v473 = vlaneseq
        %v474 = vshrl.u32 %v473, 7
        %v475 = vsub.s32 %v225, %v474
        %v476 = vrot.slane %v397, %v475
        %v477 = vlaneseq
        %v478 = vshrl.u32 %v477, 7
        %v479 = vsub.s32 %v439, %v478
        %v480 = vrot.slane %v400, %v479
        %v481 = vsel %vm444, %v480, %v476
        %v482 = vlaneseq
        %v483 = vshrl.u32 %v482, 7
        %v484 = vsub.s32 %v225, %v483
        %v485 = vrot.slane %v403, %v484
        %v486 = vlaneseq
        %v487 = vshrl.u32 %v486, 7
        %v488 = vsub.s32 %v439, %v487
        %v489 = vrot.slane %v406, %v488
        %v490 = vsel %vm444, %v489, %v485
        %v491 = vlaneseq
        %v492 = vshrl.u32 %v491, 7
        %v493 = vsub.s32 %v225, %v492
        %v494 = vrot.slane %v409, %v493
        %v495 = vlaneseq
        %v496 = vshrl.u32 %v495, 7
        %v497 = vsub.s32 %v439, %v496
        %v498 = vrot.slane %v412, %v497
        %v499 = vsel %vm444, %v498, %v494
        %v500 = vlaneseq
        %v501 = vshrl.u32 %v500, 7
        %v502 = vsub.s32 %v225, %v501
        %v503 = vrot.slane %v415, %v502
        %v504 = vlaneseq
        %v505 = vshrl.u32 %v504, 7
        %v506 = vsub.s32 %v439, %v505
        %v507 = vrot.slane %v418, %v506
        %v508 = vsel %vm444, %v507, %v503
        %vm509 = vcmask 1041409
        %v510 = vsel %vm509, %v454, %v445
        %vm511 = vcmask 1042434
        %v512 = vsel %vm511, %v463, %v510
        %vm513 = vcmask 1043459
        %v514 = vsel %vm513, %v472, %v512
        %vm515 = vcmask 1044484
        %v516 = vsel %vm515, %v481, %v514
        %vm517 = vcmask 1045509
        %v518 = vsel %vm517, %v490, %v516
        %vm519 = vcmask 1046534
        %v520 = vsel %vm519, %v499, %v518
        %vm521 = vcmask 1047559
        %v522 = vsel %vm521, %v508, %v520
        %vm524 = vcmask 130048
        %v525 = vsel %vm524, %v522, -inf
        %526 = vmax.xlane.f32.xlu0 %v525
        %v527 = vpop.xlane.xlu0 %526
        %v529 = vlaneseq
        %v530 = vshrl.u32 %v529, 7
        %v531 = vsub.s32 0, %v530
        %v532 = vrot.slane %v527, %v531
        %v533 = vlaneseq
        %v534 = vshrl.u32 %v533, 7
        %v535 = vsub.s32 1, %v534
        %v536 = vrot.slane %v527, %v535
        %v537 = vlaneseq
        %v538 = vshrl.u32 %v537, 7
        %v539 = vsub.s32 2, %v538
        %v540 = vrot.slane %v527, %v539
        %v541 = vlaneseq
        %v542 = vshrl.u32 %v541, 7
        %v543 = vsub.s32 3, %v542
        %v544 = vrot.slane %v527, %v543
        %v545 = vlaneseq
        %v546 = vshrl.u32 %v545, 7
        %v547 = vsub.s32 4, %v546
        %v548 = vrot.slane %v527, %v547
        %v549 = vlaneseq
        %v550 = vshrl.u32 %v549, 7
        %v551 = vsub.s32 5, %v550
        %v552 = vrot.slane %v527, %v551
        %v553 = vlaneseq
        %v554 = vshrl.u32 %v553, 7
        %v555 = vsub.s32 6, %v554
        %v556 = vrot.slane %v527, %v555
        %v557 = vlaneseq
        %v558 = vshrl.u32 %v557, 7
        %v559 = vsub.s32 7, %v558
        %v560 = vrot.slane %v527, %v559
        %v569 = vsub.f32 %v373, %v532
        %v570 = vsub.f32 %v376, %v532
        %v571 = vsub.f32 %v379, %v536
        %v572 = vsub.f32 %v382, %v536
        %v573 = vsub.f32 %v385, %v540
        %v574 = vsub.f32 %v388, %v540
        %v575 = vsub.f32 %v391, %v544
        %v576 = vsub.f32 %v394, %v544
        %v577 = vsub.f32 %v397, %v548
        %v578 = vsub.f32 %v400, %v548
        %v579 = vsub.f32 %v403, %v552
        %v580 = vsub.f32 %v406, %v552
        %v581 = vsub.f32 %v409, %v556
        %v582 = vsub.f32 %v412, %v556
        %v583 = vsub.f32 %v415, %v560
        %v584 = vsub.f32 %v418, %v560
        %v585 = vmul.f32 %v569, 1.442695
        %v586 = vpow.pop %v585
        %v587 = vmul.f32 %v570, 1.442695
        %v588 = vpow.pop %v587
        %v589 = vmul.f32 %v571, 1.442695
        %v590 = vpow.pop %v589
        %v591 = vmul.f32 %v572, 1.442695
        %v592 = vpow.pop %v591
        %v593 = vmul.f32 %v573, 1.442695
        %v594 = vpow.pop %v593
        %v595 = vmul.f32 %v574, 1.442695
        %v596 = vpow.pop %v595
        %v597 = vmul.f32 %v575, 1.442695
        %v598 = vpow.pop %v597
        %v599 = vmul.f32 %v576, 1.442695
        %v600 = vpow.pop %v599
        %v601 = vmul.f32 %v577, 1.442695
        %v602 = vpow.pop %v601
        %v603 = vmul.f32 %v578, 1.442695
        %v604 = vpow.pop %v603
        %v605 = vmul.f32 %v579, 1.442695
        %v606 = vpow.pop %v605
        %v607 = vmul.f32 %v580, 1.442695
        %v608 = vpow.pop %v607
        %v609 = vmul.f32 %v581, 1.442695
        %v610 = vpow.pop %v609
        %v611 = vmul.f32 %v582, 1.442695
        %v612 = vpow.pop %v611
        %v613 = vmul.f32 %v583, 1.442695
        %v614 = vpow.pop %v613
        %v615 = vmul.f32 %v584, 1.442695
        %v616 = vpow.pop %v615
        %633 = vset.pattern.permute.xlu0 0
        %634 = vperm.xlu0 %633, %v586
        %v635 = vpop.permute.xlu0 %634
        %636 = vset.pattern.permute.xlu0 0
        %637 = vperm.xlu0 %636, %v588
        %v638 = vpop.permute.xlu0 %637
        %639 = vset.pattern.permute.xlu0 0
        %640 = vperm.xlu0 %639, %v590
        %v641 = vpop.permute.xlu0 %640
        %642 = vset.pattern.permute.xlu0 0
        %643 = vperm.xlu0 %642, %v592
        %v644 = vpop.permute.xlu0 %643
        %645 = vset.pattern.permute.xlu0 0
        %646 = vperm.xlu0 %645, %v594
        %v647 = vpop.permute.xlu0 %646
        %648 = vset.pattern.permute.xlu0 0
        %649 = vperm.xlu0 %648, %v596
        %v650 = vpop.permute.xlu0 %649
        %651 = vset.pattern.permute.xlu0 0
        %652 = vperm.xlu0 %651, %v598
        %v653 = vpop.permute.xlu0 %652
        %654 = vset.pattern.permute.xlu0 0
        %655 = vperm.xlu0 %654, %v600
        %v656 = vpop.permute.xlu0 %655
        %657 = vset.pattern.permute.xlu0 0
        %658 = vperm.xlu0 %657, %v602
        %v659 = vpop.permute.xlu0 %658
        %660 = vset.pattern.permute.xlu0 0
        %661 = vperm.xlu0 %660, %v604
        %v662 = vpop.permute.xlu0 %661
        %663 = vset.pattern.permute.xlu0 0
        %664 = vperm.xlu0 %663, %v606
        %v665 = vpop.permute.xlu0 %664
        %666 = vset.pattern.permute.xlu0 0
        %667 = vperm.xlu0 %666, %v608
        %v668 = vpop.permute.xlu0 %667
        %669 = vset.pattern.permute.xlu0 0
        %670 = vperm.xlu0 %669, %v610
        %v671 = vpop.permute.xlu0 %670
        %672 = vset.pattern.permute.xlu0 0
        %673 = vperm.xlu0 %672, %v612
        %v674 = vpop.permute.xlu0 %673
        %675 = vset.pattern.permute.xlu0 0
        %676 = vperm.xlu0 %675, %v614
        %v677 = vpop.permute.xlu0 %676
        %678 = vset.pattern.permute.xlu0 0
        %679 = vperm.xlu0 %678, %v616
        %v680 = vpop.permute.xlu0 %679
        %v681 = vlaneseq
        %v682 = vshrl.u32 %v681, 7
        %v683 = vsub.s32 %v225, %v682
        %v684 = vrot.slane %v635, %v683
        %v685 = vlaneseq
        %v686 = vshrl.u32 %v685, 7
        %v687 = vsub.s32 %v439, %v686
        %v688 = vrot.slane %v638, %v687
        %v689 = vsel %vm444, %v688, %v684
        %v690 = vlaneseq
        %v691 = vshrl.u32 %v690, 7
        %v692 = vsub.s32 %v225, %v691
        %v693 = vrot.slane %v641, %v692
        %v694 = vlaneseq
        %v695 = vshrl.u32 %v694, 7
        %v696 = vsub.s32 %v439, %v695
        %v697 = vrot.slane %v644, %v696
        %v698 = vsel %vm444, %v697, %v693
        %v699 = vlaneseq
        %v700 = vshrl.u32 %v699, 7
        %v701 = vsub.s32 %v225, %v700
        %v702 = vrot.slane %v647, %v701
        %v703 = vlaneseq
        %v704 = vshrl.u32 %v703, 7
        %v705 = vsub.s32 %v439, %v704
        %v706 = vrot.slane %v650, %v705
        %v707 = vsel %vm444, %v706, %v702
        %v708 = vlaneseq
        %v709 = vshrl.u32 %v708, 7
        %v710 = vsub.s32 %v225, %v709
        %v711 = vrot.slane %v653, %v710
        %v712 = vlaneseq
        %v713 = vshrl.u32 %v712, 7
        %v714 = vsub.s32 %v439, %v713
        %v715 = vrot.slane %v656, %v714
        %v716 = vsel %vm444, %v715, %v711
        %v717 = vlaneseq
        %v718 = vshrl.u32 %v717, 7
        %v719 = vsub.s32 %v225, %v718
        %v720 = vrot.slane %v659, %v719
        %v721 = vlaneseq
        %v722 = vshrl.u32 %v721, 7
        %v723 = vsub.s32 %v439, %v722
        %v724 = vrot.slane %v662, %v723
        %v725 = vsel %vm444, %v724, %v720
        %v726 = vlaneseq
        %v727 = vshrl.u32 %v726, 7
        %v728 = vsub.s32 %v225, %v727
        %v729 = vrot.slane %v665, %v728
        %v730 = vlaneseq
        %v731 = vshrl.u32 %v730, 7
        %v732 = vsub.s32 %v439, %v731
        %v733 = vrot.slane %v668, %v732
        %v734 = vsel %vm444, %v733, %v729
        %v735 = vlaneseq
        %v736 = vshrl.u32 %v735, 7
        %v737 = vsub.s32 %v225, %v736
        %v738 = vrot.slane %v671, %v737
        %v739 = vlaneseq
        %v740 = vshrl.u32 %v739, 7
        %v741 = vsub.s32 %v439, %v740
        %v742 = vrot.slane %v674, %v741
        %v743 = vsel %vm444, %v742, %v738
        %v744 = vlaneseq
        %v745 = vshrl.u32 %v744, 7
        %v746 = vsub.s32 %v225, %v745
        %v747 = vrot.slane %v677, %v746
        %v748 = vlaneseq
        %v749 = vshrl.u32 %v748, 7
        %v750 = vsub.s32 %v439, %v749
        %v751 = vrot.slane %v680, %v750
        %v752 = vsel %vm444, %v751, %v747
        %v753 = vsel %vm509, %v698, %v689
        %v754 = vsel %vm511, %v707, %v753
        %v755 = vsel %vm513, %v716, %v754
        %v756 = vsel %vm515, %v725, %v755
        %v757 = vsel %vm517, %v734, %v756
        %v758 = vsel %vm519, %v743, %v757
        %v759 = vsel %vm521, %v752, %v758
        %v761 = vsel %vm524, %v759, 0.0
        %762 = vadd.xlane.f32.xlu0 %v761
        %v763 = vpop.xlane.xlu0 %762
        %v764 = vrcp.pop %v763
        %v765 = vmul.f32 %v763, %v764
        %v766 = vsub.f32 2.0, %v765
        %v767 = vmul.f32 %v764, %v766
        %v769 = vlaneseq
        %v770 = vshrl.u32 %v769, 7
        %v771 = vsub.s32 0, %v770
        %v772 = vrot.slane %v767, %v771
        %v773 = vlaneseq
        %v774 = vshrl.u32 %v773, 7
        %v775 = vsub.s32 1, %v774
        %v776 = vrot.slane %v767, %v775
        %v777 = vlaneseq
        %v778 = vshrl.u32 %v777, 7
        %v779 = vsub.s32 2, %v778
        %v780 = vrot.slane %v767, %v779
        %v781 = vlaneseq
        %v782 = vshrl.u32 %v781, 7
        %v783 = vsub.s32 3, %v782
        %v784 = vrot.slane %v767, %v783
        %v785 = vlaneseq
        %v786 = vshrl.u32 %v785, 7
        %v787 = vsub.s32 4, %v786
        %v788 = vrot.slane %v767, %v787
        %v789 = vlaneseq
        %v790 = vshrl.u32 %v789, 7
        %v791 = vsub.s32 5, %v790
        %v792 = vrot.slane %v767, %v791
        %v793 = vlaneseq
        %v794 = vshrl.u32 %v793, 7
        %v795 = vsub.s32 6, %v794
        %v796 = vrot.slane %v767, %v795
        %v797 = vlaneseq
        %v798 = vshrl.u32 %v797, 7
        %v799 = vsub.s32 7, %v798
        %v800 = vrot.slane %v767, %v799
        %v809 = vmul.f32 %v586, %v772
        %v810 = vmul.f32 %v588, %v772
        %v811 = vmul.f32 %v590, %v776
        %v812 = vmul.f32 %v592, %v776
        %v813 = vmul.f32 %v594, %v780
        %v814 = vmul.f32 %v596, %v780
        %v815 = vmul.f32 %v598, %v784
        %v816 = vmul.f32 %v600, %v784
        %v817 = vmul.f32 %v602, %v788
        %v818 = vmul.f32 %v604, %v788
        %v819 = vmul.f32 %v606, %v792
        %v820 = vmul.f32 %v608, %v792
        %v821 = vmul.f32 %v610, %v796
        %v822 = vmul.f32 %v612, %v796
        %v823 = vmul.f32 %v614, %v800
        %v824 = vmul.f32 %v616, %v800
        %826 = vset.pattern.permute.xlu0 0
        %827 = vperm.xlu0 %826, %v809
        %v828 = vpop.permute.xlu0 %827
        %831 = vset.pattern.permute.xlu0 0
        %832 = vperm.xlu0 %831, %v810
        %v833 = vpop.permute.xlu0 %832
        %836 = vset.pattern.permute.xlu0 0
        %837 = vperm.xlu0 %836, %v811
        %v838 = vpop.permute.xlu0 %837
        %841 = vset.pattern.permute.xlu0 0
        %842 = vperm.xlu0 %841, %v812
        %v843 = vpop.permute.xlu0 %842
        %846 = vset.pattern.permute.xlu0 0
        %847 = vperm.xlu0 %846, %v813
        %v848 = vpop.permute.xlu0 %847
        %851 = vset.pattern.permute.xlu0 0
        %852 = vperm.xlu0 %851, %v814
        %v853 = vpop.permute.xlu0 %852
        %856 = vset.pattern.permute.xlu0 0
        %857 = vperm.xlu0 %856, %v815
        %v858 = vpop.permute.xlu0 %857
        %861 = vset.pattern.permute.xlu0 0
        %862 = vperm.xlu0 %861, %v816
        %v863 = vpop.permute.xlu0 %862
        %866 = vset.pattern.permute.xlu0 0
        %867 = vperm.xlu0 %866, %v817
        %v868 = vpop.permute.xlu0 %867
        %871 = vset.pattern.permute.xlu0 0
        %872 = vperm.xlu0 %871, %v818
        %v873 = vpop.permute.xlu0 %872
        %876 = vset.pattern.permute.xlu0 0
        %877 = vperm.xlu0 %876, %v819
        %v878 = vpop.permute.xlu0 %877
        %881 = vset.pattern.permute.xlu0 0
        %882 = vperm.xlu0 %881, %v820
        %v883 = vpop.permute.xlu0 %882
        %886 = vset.pattern.permute.xlu0 0
        %887 = vperm.xlu0 %886, %v821
        %v888 = vpop.permute.xlu0 %887
        %891 = vset.pattern.permute.xlu0 0
        %892 = vperm.xlu0 %891, %v822
        %v893 = vpop.permute.xlu0 %892
        %896 = vset.pattern.permute.xlu0 0
        %897 = vperm.xlu0 %896, %v823
        %v898 = vpop.permute.xlu0 %897
        %901 = vset.pattern.permute.xlu0 0
        %902 = vperm.xlu0 %901, %v824
        %v903 = vpop.permute.xlu0 %902
        %v905 = vmul.f32 %v828, %v208
        %v906 = vmul.f32 %v833, %v209
        %v907 = vmul.f32 %v838, %v210
        %v908 = vmul.f32 %v843, %v211
        %v909 = vmul.f32 %v848, %v212
        %v910 = vmul.f32 %v853, %v213
        %v911 = vmul.f32 %v858, %v214
        %v912 = vmul.f32 %v863, %v215
        %v913 = vmul.f32 %v868, %v216
        %v914 = vmul.f32 %v873, %v217
        %v915 = vmul.f32 %v878, %v218
        %v916 = vmul.f32 %v883, %v219
        %v917 = vmul.f32 %v888, %v220
        %v918 = vmul.f32 %v893, %v221
        %v919 = vmul.f32 %v898, %v222
        %v920 = vmul.f32 %v903, %v223
        %v921 = vsel %vm298, %v905, 0.0
        %v922 = vsel %vm298, %v906, 0.0
        %v923 = vadd.f32 %v921, %v922
        %v924 = vrot.slane %v923, 4
        %v925 = vadd.f32 %v923, %v924
        %v926 = vrot.slane %v925, 2
        %v927 = vadd.f32 %v925, %v926
        %v928 = vrot.slane %v927, 1
        %v929 = vadd.f32 %v927, %v928
        %v930 = vsel %vm298, %v907, 0.0
        %v931 = vsel %vm298, %v908, 0.0
        %v932 = vadd.f32 %v930, %v931
        %v933 = vrot.slane %v932, 4
        %v934 = vadd.f32 %v932, %v933
        %v935 = vrot.slane %v934, 2
        %v936 = vadd.f32 %v934, %v935
        %v937 = vrot.slane %v936, 1
        %v938 = vadd.f32 %v936, %v937
        %v939 = vsel %vm298, %v909, 0.0
        %v940 = vsel %vm298, %v910, 0.0
        %v941 = vadd.f32 %v939, %v940
        %v942 = vrot.slane %v941, 4
        %v943 = vadd.f32 %v941, %v942
        %v944 = vrot.slane %v943, 2
        %v945 = vadd.f32 %v943, %v944
        %v946 = vrot.slane %v945, 1
        %v947 = vadd.f32 %v945, %v946
        %v948 = vsel %vm298, %v911, 0.0
        %v949 = vsel %vm298, %v912, 0.0
        %v950 = vadd.f32 %v948, %v949
        %v951 = vrot.slane %v950, 4
        %v952 = vadd.f32 %v950, %v951
        %v953 = vrot.slane %v952, 2
        %v954 = vadd.f32 %v952, %v953
        %v955 = vrot.slane %v954, 1
        %v956 = vadd.f32 %v954, %v955
        %v957 = vsel %vm298, %v913, 0.0
        %v958 = vsel %vm298, %v914, 0.0
        %v959 = vadd.f32 %v957, %v958
        %v960 = vrot.slane %v959, 4
        %v961 = vadd.f32 %v959, %v960
        %v962 = vrot.slane %v961, 2
        %v963 = vadd.f32 %v961, %v962
        %v964 = vrot.slane %v963, 1
        %v965 = vadd.f32 %v963, %v964
        %v966 = vsel %vm298, %v915, 0.0
        %v967 = vsel %vm298, %v916, 0.0
        %v968 = vadd.f32 %v966, %v967
        %v969 = vrot.slane %v968, 4
        %v970 = vadd.f32 %v968, %v969
        %v971 = vrot.slane %v970, 2
        %v972 = vadd.f32 %v970, %v971
        %v973 = vrot.slane %v972, 1
        %v974 = vadd.f32 %v972, %v973
        %v975 = vsel %vm298, %v917, 0.0
        %v976 = vsel %vm298, %v918, 0.0
        %v977 = vadd.f32 %v975, %v976
        %v978 = vrot.slane %v977, 4
        %v979 = vadd.f32 %v977, %v978
        %v980 = vrot.slane %v979, 2
        %v981 = vadd.f32 %v979, %v980
        %v982 = vrot.slane %v981, 1
        %v983 = vadd.f32 %v981, %v982
        %v984 = vsel %vm298, %v919, 0.0
        %v985 = vsel %vm298, %v920, 0.0
        %v986 = vadd.f32 %v984, %v985
        %v987 = vrot.slane %v986, 4
        %v988 = vadd.f32 %v986, %v987
        %v989 = vrot.slane %v988, 2
        %v990 = vadd.f32 %v988, %v989
        %v991 = vrot.slane %v990, 1
        %v992 = vadd.f32 %v990, %v991
        %v993 = vtanh.pop %v929
        %v994 = vtanh.pop %v938
        %v995 = vtanh.pop %v947
        %v996 = vtanh.pop %v956
        %v997 = vtanh.pop %v965
        %v998 = vtanh.pop %v974
        %v999 = vtanh.pop %v983
        %v1000 = vtanh.pop %v992
        %v1009 = vsel %vm509, %v994, %v993
        %v1010 = vsel %vm511, %v995, %v1009
        %v1011 = vsel %vm513, %v996, %v1010
        %v1012 = vsel %vm515, %v997, %v1011
        %v1013 = vsel %vm517, %v998, %v1012
        %v1014 = vsel %vm519, %v999, %v1013
        %v1015 = vsel %vm521, %v1000, %v1014
        %1017 = vst.msk [vmem:[%s202] sm:$0xff] %vm298, %v1015
        %s1018 = sand.u32 %s101, 1
        %s1019 = scalar_lea.sflag [#allocation4], %s1018
        %s1020 = sand.u32 %s101, 1
        %s1021 = smul.addr %s1020, 8
        %s1022 = scalar_lea.vmem [#allocation5], %s1021
        // Predicated region
        $region37: #{tpu_custom_call.1} parent=31 // pred_check
          %p1023 = pneg %p111
        $region38: #{tpu_custom_call.1} parent=31 // pred_check_branch
          %1025 = sbr.rel (%p1023) target = $region40
        $region39: #{tpu_custom_call.1} parent=31 // pred_region
          %s1027 = ssub.s32 128, 128
          %1028 = vsyncadd %s1019, %s1027
          %s1029 = smul.addr %s20, 128
          %s1030 = scalar_lea.hbm %s3, %s1029
          %s1032 = sshll.u32 %s1022, 4
          %s1033 = int_to_ptr.vmem [resolvable:$true] %s1032
          %1035 = dma.vmem_to_hbm [thread:$0]  %s1033, 128, %s1030, %s1019
        $region40: #{tpu_custom_call.1} parent=31 // pred_fallthru
          _
      $region32: #{tpu_custom_call.1} parent=5 // pred_fallthru
        _
      %p1036 = scmp.le.s32.totalorder 2, %s15
      // Predicated region
      $region41: #{tpu_custom_call.1} parent=5 // pred_check
        %p1037 = pneg %p1036
      $region42: #{tpu_custom_call.1} parent=5 // pred_check_branch
        %1039 = sbr.rel (%p1037) target = $region44
      $region43: #{tpu_custom_call.1} parent=5 // pred_region
        %s1040 = ssub.s32 %s15, 2
        // Predicated region
        $region45: #{tpu_custom_call.1} parent=43 // pred_check
          %p1041 = pneg %p117
        $region46: #{tpu_custom_call.1} parent=43 // pred_check_branch
          %1043 = sbr.rel (%p1041) target = $region48
        $region47: #{tpu_custom_call.1} parent=43 // pred_region
          %s1044 = sand.u32 %s102, 1
          %s1045 = scalar_lea.sflag [#allocation4], %s1044
          %s1046 = sand.u32 %s102, 1
          %s1047 = smul.addr %s1046, 8
          %s1048 = scalar_lea.vmem [#allocation5], %s1047
          %1049 = dma.done %s1045, 128
        $region48: #{tpu_custom_call.1} parent=43 // pred_fallthru
          _
      $region44: #{tpu_custom_call.1} parent=5 // pred_fallthru
        _
    $region6: #{tpu_custom_call.1} parent=1 // loop_footer
      %s19 = sadd.s32 1, %s15
    $region7: #{tpu_custom_call.1} parent=1 // loop_footer_branch
      %14 = sbr.rel target = $region3
    $region8: #{tpu_custom_call.1} parent=1 // loop_exit
      _
    %1050 = vsyncpa [#allocation3], 1
    %s1051 = scalar_lea.sflag [#allocation3], 1
    %1052 = vsyncpa %s1051, 1
    %1053 = vsyncpa [#allocation4], 1
    %s1054 = scalar_lea.sflag [#allocation4], 1
    %1055 = vsyncpa %s1054, 1

</llo_original>
